<compile_context>
chip_gen: v7x
topology: tpu7x:2x2x1
jax: 0.10.0
libtpu: 0.0.40
codegen_flags: <defaults>
</compile_context>

<pallas_src>
import functools

import jax
import jax.numpy as jnp
import numpy as np
from jax import lax
from jax.experimental import pallas as pl
from jax.experimental.pallas import tpu as pltpu

_EPS = 1e-7
_LANE = 128
_MAX_TILE_ROWS = 4096             # (4096, 128) f32 = 2 MiB per buffer
_VMEM_LIMIT = 32 * 1024 * 1024    # worst case 5 bufs x 2 (double-buffer) x 2 MiB = 20 MiB
_FLOPS_PER_ELEM = 90              # ~27 VALU ops per digamma x 3 + combine
_TRANS_PER_ELEM = 9               # 3 logs + 6 approx reciprocals


def _newton_recip(x):
    """EUP approx reciprocal + one Newton step (VPU) -> ~full f32 precision."""
    r = pl.reciprocal(x, approx=True)
    return r * (2.0 - x * r)


def _digamma(x):
    """psi(x) for x > 0 via psi(x) = psi(x+3) - [1/x + 1/(x+1) + 1/(x+2)].

    The recurrence sum is a single rational (3x^2+6x+2)/(x(x+1)(x+2)) -> one
    reciprocal instead of three divides; psi(z), z = x+3 >= 3, uses the
    asymptotic series (truncation error <= 1/(240 z^8) < 7e-7 at z=3).  For the
    rational only, x is clamped at 1e6 so the cubic denominator stays far from
    f32 overflow; beyond that the recurrence contributes negligibly vs log(x).
    """
    xs = jnp.minimum(x, 1e6)
    num = (3.0 * xs + 6.0) * xs + 2.0          # 3x^2 + 6x + 2  (Horner)
    den = xs * (xs + 1.0) * (xs + 2.0)         # x (x+1) (x+2)
    s = num * _newton_recip(den)

    z = x + 3.0
    inv = _newton_recip(z)
    inv2 = inv * inv
    series = (
        jnp.log(z)
        - 0.5 * inv
        - inv2 * (1.0 / 12.0 - inv2 * (1.0 / 120.0 - inv2 * (1.0 / 252.0)))
    )
    return series - s


def _loss_block(a_ref, b_ref, y_ref, w_ref):
    # dtype up-conversion happens in-kernel (inputs ship in native dtype).
    a = jnp.maximum(a_ref[...].astype(jnp.float32), _EPS)
    b = jnp.maximum(b_ref[...].astype(jnp.float32), _EPS)
    y = y_ref[...].astype(jnp.float32)
    d_ab = _digamma(a + b)
    d_a = _digamma(a)
    d_b = _digamma(b)
    # -(y*(d_a - d_ab) + (1-y)*(d_b - d_ab))  ==  (d_ab - d_b) - y*(d_a - d_b)
    loss = (d_ab - d_b) - y * (d_a - d_b)
    if w_ref is not None:
        loss = loss * w_ref[...].astype(jnp.float32)
    return loss


def _elementwise_kernel(*refs, weighted):
    if weighted:
        a_ref, b_ref, y_ref, w_ref, o_ref = refs
    else:
        a_ref, b_ref, y_ref, o_ref = refs
        w_ref = None
    o_ref[...] = _loss_block(a_ref, b_ref, y_ref, w_ref)


def _sum_kernel(*refs, weighted, tile_rows, steps_per_core, grid_steps, rows_k, need_mask):
    if weighted:
        a_ref, b_ref, y_ref, w_ref, o_ref = refs
    else:
        a_ref, b_ref, y_ref, o_ref = refs
        w_ref = None

    c = pl.program_id(0)   # "parallel" core axis (size 2 -> one partial per TC on v7x)
    i = pl.program_id(1)   # "arbitrary" reduction axis

    @pl.when(i == 0)
    def _init():
        o_ref[...] = jnp.zeros_like(o_ref)

    loss = _loss_block(a_ref, b_ref, y_ref, w_ref)

    if need_mask:
        # Only the last real block (partial rows) and any clamped duplicate
        # blocks need masking; every earlier block accumulates unmasked.
        g = c * steps_per_core + i
        last = grid_steps - 1

        @pl.when(g < last)
        def _full():
            o_ref[...] += jnp.sum(loss, axis=0, keepdims=True)

        @pl.when(g >= last)
        def _masked():
            row = lax.broadcasted_iota(jnp.int32, loss.shape, 0)
            valid = (g * tile_rows + row) < rows_k   # row-based: no i32 overflow
            o_ref[...] += jnp.sum(jnp.where(valid, loss, 0.0), axis=0, keepdims=True)
    else:
        o_ref[...] += jnp.sum(loss, axis=0, keepdims=True)


def _loss_dense_jax(a, b, y, w=None):
    """Plain-JAX loss (used for the <128-element ragged tail and as reference)."""
    dg = jax.scipy.special.digamma
    a = jnp.maximum(a.astype(jnp.float32), _EPS)
    b = jnp.maximum(b.astype(jnp.float32), _EPS)
    y = y.astype(jnp.float32)
    d_ab = dg(a + b)
    d_a = dg(a)
    d_b = dg(b)
    loss = (d_ab - d_b) - y * (d_a - d_b)
    if w is not None:
        loss = loss * w.astype(jnp.float32)
    return loss


def beta_bernoulli_loss(alpha, beta, labels, weighting=None, reduction=None):
    """Pallas TPU implementation of BetaBernoulliLoss.forward."""
    if reduction not in (None, "sum", "mean"):
        raise ValueError(f"unsupported reduction: {reduction!r}")

    orig_shape = jnp.shape(alpha)
    n = int(np.prod(orig_shape))
    weighted = weighting is not None

    tensors = [alpha, beta, labels] + ([weighting] if weighted else [])
    flats = [jnp.reshape(jnp.asarray(x), (-1,)) for x in tensors]
    n_in = len(flats)

    rows_k = n // _LANE          # full lane-rows that go through the kernel
    n_k = rows_k * _LANE
    rem = n - n_k                # <128-element ragged tail handled in plain JAX

    tail_loss = None
    if rem:
        tail_loss = _loss_dense_jax(*[f[n_k:] for f in flats])

    head = None
    if rows_k:
        # Aligned prefix: a free reshape when n is already a multiple of 128,
        # otherwise a prefix slice (still no jnp.pad full-array copies).
        slabs = [(f[:n_k] if rem else f).reshape(rows_k, _LANE) for f in flats]
        tile_rows = min(rows_k, _MAX_TILE_ROWS)
        grid_steps = -(-rows_k // tile_rows)
        in_bytes = sum(int(np.dtype(f.dtype).itemsize) for f in flats) * n_k

        if reduction is None:
            in_spec = pl.BlockSpec((tile_rows, _LANE), lambda i: (i, 0))
            kernel = functools.partial(_elementwise_kernel, weighted=weighted)
            head = pl.pallas_call(
                kernel,
                out_shape=jax.ShapeDtypeStruct((rows_k, _LANE), jnp.float32),
                grid_spec=pltpu.PrefetchScalarGridSpec(
                    num_scalar_prefetch=0,
                    grid=(grid_steps,),
                    in_specs=[in_spec] * n_in,
                    out_specs=in_spec,
                ),
                compiler_params=pltpu.CompilerParams(
                    dimension_semantics=("parallel",),
                    vmem_limit_bytes=_VMEM_LIMIT,
                ),
                cost_estimate=pl.CostEstimate(
                    flops=_FLOPS_PER_ELEM * n_k,
                    transcendentals=_TRANS_PER_ELEM * n_k,
                    bytes_accessed=in_bytes + 4 * n_k,
                ),
            )(*slabs)
        else:
            # Fused on-chip reduction: each core accumulates its own (1, 128)
            # partial-sum block ("parallel" leading axis -> both TCs on v7x).
            num_cores = 2 if grid_steps >= 2 else 1
            steps_per_core = -(-grid_steps // num_cores)
            need_mask = (rows_k % tile_rows != 0) or (num_cores * steps_per_core != grid_steps)

            in_spec = pl.BlockSpec(
                (tile_rows, _LANE),
                lambda c, i: (jnp.minimum(c * steps_per_core + i, grid_steps - 1), 0),
            )
            kernel = functools.partial(
                _sum_kernel,
                weighted=weighted,
                tile_rows=tile_rows,
                steps_per_core=steps_per_core,
                grid_steps=grid_steps,
                rows_k=rows_k,
                need_mask=need_mask,
            )
            head = pl.pallas_call(
                kernel,
                out_shape=jax.ShapeDtypeStruct((1, num_cores * _LANE), jnp.float32),
                grid_spec=pltpu.PrefetchScalarGridSpec(
                    num_scalar_prefetch=0,
                    grid=(num_cores, steps_per_core),
                    in_specs=[in_spec] * n_in,
                    out_specs=pl.BlockSpec((1, _LANE), lambda c, i: (0, c)),
                ),
                compiler_params=pltpu.CompilerParams(
                    dimension_semantics=("parallel", "arbitrary"),
                    vmem_limit_bytes=_VMEM_LIMIT,
                ),
                cost_estimate=pl.CostEstimate(
                    flops=_FLOPS_PER_ELEM * n_k,
                    transcendentals=_TRANS_PER_ELEM * n_k,
                    bytes_accessed=in_bytes + 4 * num_cores * _LANE,
                ),
            )(*slabs)

    if reduction is None:
        if head is None:
            out_flat = tail_loss
        elif rem:
            out_flat = jnp.concatenate([head.reshape(-1), tail_loss])
        else:
            out_flat = head.reshape(-1)
        return out_flat.reshape(orig_shape)

    total = jnp.float32(0.0)
    if head is not None:
        total = total + jnp.sum(head)
    if rem:
        total = total + jnp.sum(tail_loss)
    if reduction == "sum":
        return total
    return total / jnp.float32(n)


def _reference(alpha, beta, labels, weighting=None, reduction=None):
    loss = _loss_dense_jax(alpha, beta, labels, weighting)
    if reduction == "sum":
        return loss.sum()
    if reduction == "mean":
        return loss.mean()
    return loss


if __name__ == "__main__":
    key = jax.random.PRNGKey(0)
    k1, k2, k3, k4 = jax.random.split(key, 4)
    shape = (2, 4, 16, 16)  # NCHW-style logits of a Beta head (2048 elements)

    alpha = jax.random.uniform(k1, shape, jnp.float32, minval=0.1, maxval=5.0)
    beta = jax.random.uniform(k2, shape, jnp.float32, minval=0.1, maxval=5.0)
    labels = jax.random.bernoulli(k3, 0.5, shape).astype(jnp.float32)
    weighting = jax.random.uniform(k4, shape, jnp.float32, minval=0.5, maxval=1.5)

    # reduction=None (module default), no weighting
    out = beta_bernoulli_loss(alpha, beta, labels)
    jax.block_until_ready(out)
    np.testing.assert_allclose(
        np.asarray(out), np.asarray(_reference(alpha, beta, labels)),
        rtol=1e-4, atol=2e-5,
    )

    # weighted + fused mean reduction (megacore-parallel sum path)
    out_m = beta_bernoulli_loss(alpha, beta, labels, weighting=weighting, reduction="mean")
    jax.block_until_ready(out_m)
    np.testing.assert_allclose(
        np.asarray(out_m),
        np.asarray(_reference(alpha, beta, labels, weighting=weighting, reduction="mean")),
        rtol=1e-4, atol=2e-5,
    )

    # weighted + fused sum reduction
    out_s = beta_bernoulli_loss(alpha, beta, labels, weighting=weighting, reduction="sum")
    jax.block_until_ready(out_s)
    np.testing.assert_allclose(
        np.asarray(out_s),
        np.asarray(_reference(alpha, beta, labels, weighting=weighting, reduction="sum")),
        rtol=1e-4, atol=1e-3,
    )

    # ragged size (231 elements): aligned 128-element prefix through the kernel,
    # <128-element tail in plain JAX — exercises the no-pad split paths.
    rshape = (3, 7, 11)
    ka, kb, kc = jax.random.split(k1, 3)
    a2 = jax.random.uniform(ka, rshape, jnp.float32, minval=0.1, maxval=5.0)
    b2 = jax.random.uniform(kb, rshape, jnp.float32, minval=0.1, maxval=5.0)
    y2 = jax.random.bernoulli(kc, 0.5, rshape).astype(jnp.float32)

    out_e = beta_bernoulli_loss(a2, b2, y2)
    jax.block_until_ready(out_e)
    np.testing.assert_allclose(
        np.asarray(out_e), np.asarray(_reference(a2, b2, y2)), rtol=1e-4, atol=2e-5
    )

    out_rs = beta_bernoulli_loss(a2, b2, y2, reduction="sum")
    jax.block_until_ready(out_rs)
    np.testing.assert_allclose(
        np.asarray(out_rs), np.asarray(_reference(a2, b2, y2, reduction="sum")),
        rtol=1e-4, atol=1e-3,
    )

    print("KERNEL_OK")
</pallas_src>

<mosaic_0001>
module attributes {stable_mosaic.version = 11 : i64} {
  func.func @_elementwise_kernel(%arg0: i32, %arg1: memref<16x128xf32, #tpu.memory_space<vmem>>, %arg2: memref<16x128xf32, #tpu.memory_space<vmem>>, %arg3: memref<16x128xf32, #tpu.memory_space<vmem>>, %arg4: memref<16x128xf32, #tpu.memory_space<vmem>>) attributes {dimension_semantics = [#tpu.dimension_semantics<parallel>], iteration_bounds = array<i64: 1>, scalar_prefetch = 0 : i64, scratch_operands = 0 : i64, tpu.core_type = #tpu.core_type<tc>, window_params = [{transform_indices = @transform_0, window_bounds = array<i64: 16, 128>}, {transform_indices = @transform_1, window_bounds = array<i64: 16, 128>}, {transform_indices = @transform_2, window_bounds = array<i64: 16, 128>}, {transform_indices = @transform_3, window_bounds = array<i64: 16, 128>}]} {
    %c0 = arith.constant 0 : index
    %c0_0 = arith.constant 0 : index
    %0 = vector.load %arg1[%c0, %c0_0] : memref<16x128xf32, #tpu.memory_space<vmem>>, vector<16x128xf32>
    %cst = arith.constant 1.000000e-07 : f32
    %1 = vector.broadcast %cst : f32 to vector<16x128xf32>
    %2 = arith.maximumf %0, %1 : vector<16x128xf32>
    %c0_1 = arith.constant 0 : index
    %c0_2 = arith.constant 0 : index
    %3 = vector.load %arg2[%c0_1, %c0_2] : memref<16x128xf32, #tpu.memory_space<vmem>>, vector<16x128xf32>
    %cst_3 = arith.constant 1.000000e-07 : f32
    %4 = vector.broadcast %cst_3 : f32 to vector<16x128xf32>
    %5 = arith.maximumf %3, %4 : vector<16x128xf32>
    %c0_4 = arith.constant 0 : index
    %c0_5 = arith.constant 0 : index
    %6 = vector.load %arg3[%c0_4, %c0_5] : memref<16x128xf32, #tpu.memory_space<vmem>>, vector<16x128xf32>
    %7 = arith.addf %2, %5 : vector<16x128xf32>
    %cst_6 = arith.constant 1.000000e+06 : f32
    %8 = vector.broadcast %cst_6 : f32 to vector<16x128xf32>
    %9 = arith.minimumf %7, %8 : vector<16x128xf32>
    %cst_7 = arith.constant 3.000000e+00 : f32
    %10 = vector.broadcast %cst_7 : f32 to vector<16x128xf32>
    %11 = arith.mulf %10, %9 : vector<16x128xf32>
    %cst_8 = arith.constant 6.000000e+00 : f32
    %12 = vector.broadcast %cst_8 : f32 to vector<16x128xf32>
    %13 = arith.addf %11, %12 : vector<16x128xf32>
    %14 = arith.mulf %13, %9 : vector<16x128xf32>
    %cst_9 = arith.constant 2.000000e+00 : f32
    %15 = vector.broadcast %cst_9 : f32 to vector<16x128xf32>
    %16 = arith.addf %14, %15 : vector<16x128xf32>
    %cst_10 = arith.constant 1.000000e+00 : f32
    %17 = vector.broadcast %cst_10 : f32 to vector<16x128xf32>
    %18 = arith.addf %9, %17 : vector<16x128xf32>
    %19 = arith.mulf %9, %18 : vector<16x128xf32>
    %cst_11 = arith.constant 2.000000e+00 : f32
    %20 = vector.broadcast %cst_11 : f32 to vector<16x128xf32>
    %21 = arith.addf %9, %20 : vector<16x128xf32>
    %22 = arith.mulf %19, %21 : vector<16x128xf32>
    %23 = tpu.reciprocal %22 {approx = true} : vector<16x128xf32> -> vector<16x128xf32>
    %24 = arith.mulf %22, %23 : vector<16x128xf32>
    %cst_12 = arith.constant 2.000000e+00 : f32
    %25 = vector.broadcast %cst_12 : f32 to vector<16x128xf32>
    %26 = arith.subf %25, %24 : vector<16x128xf32>
    %27 = arith.mulf %23, %26 : vector<16x128xf32>
    %28 = arith.mulf %16, %27 : vector<16x128xf32>
    %cst_13 = arith.constant 3.000000e+00 : f32
    %29 = vector.broadcast %cst_13 : f32 to vector<16x128xf32>
    %30 = arith.addf %7, %29 : vector<16x128xf32>
    %31 = tpu.reciprocal %30 {approx = true} : vector<16x128xf32> -> vector<16x128xf32>
    %32 = arith.mulf %30, %31 : vector<16x128xf32>
    %cst_14 = arith.constant 2.000000e+00 : f32
    %33 = vector.broadcast %cst_14 : f32 to vector<16x128xf32>
    %34 = arith.subf %33, %32 : vector<16x128xf32>
    %35 = arith.mulf %31, %34 : vector<16x128xf32>
    %36 = arith.mulf %35, %35 : vector<16x128xf32>
    %37 = math.log %30 : vector<16x128xf32>
    %cst_15 = arith.constant 5.000000e-01 : f32
    %38 = vector.broadcast %cst_15 : f32 to vector<16x128xf32>
    %39 = arith.mulf %38, %35 : vector<16x128xf32>
    %40 = arith.subf %37, %39 : vector<16x128xf32>
    %cst_16 = arith.constant 0.0039682542 : f32
    %41 = vector.broadcast %cst_16 : f32 to vector<16x128xf32>
    %42 = arith.mulf %36, %41 : vector<16x128xf32>
    %cst_17 = arith.constant 0.00833333377 : f32
    %43 = vector.broadcast %cst_17 : f32 to vector<16x128xf32>
    %44 = arith.subf %43, %42 : vector<16x128xf32>
    %45 = arith.mulf %36, %44 : vector<16x128xf32>
    %cst_18 = arith.constant 0.0833333358 : f32
    %46 = vector.broadcast %cst_18 : f32 to vector<16x128xf32>
    %47 = arith.subf %46, %45 : vector<16x128xf32>
    %48 = arith.mulf %36, %47 : vector<16x128xf32>
    %49 = arith.subf %40, %48 : vector<16x128xf32>
    %50 = arith.subf %49, %28 : vector<16x128xf32>
    %cst_19 = arith.constant 1.000000e+06 : f32
    %51 = vector.broadcast %cst_19 : f32 to vector<16x128xf32>
    %52 = arith.minimumf %2, %51 : vector<16x128xf32>
    %cst_20 = arith.constant 3.000000e+00 : f32
    %53 = vector.broadcast %cst_20 : f32 to vector<16x128xf32>
    %54 = arith.mulf %53, %52 : vector<16x128xf32>
    %cst_21 = arith.constant 6.000000e+00 : f32
    %55 = vector.broadcast %cst_21 : f32 to vector<16x128xf32>
    %56 = arith.addf %54, %55 : vector<16x128xf32>
    %57 = arith.mulf %56, %52 : vector<16x128xf32>
    %cst_22 = arith.constant 2.000000e+00 : f32
    %58 = vector.broadcast %cst_22 : f32 to vector<16x128xf32>
    %59 = arith.addf %57, %58 : vector<16x128xf32>
    %cst_23 = arith.constant 1.000000e+00 : f32
    %60 = vector.broadcast %cst_23 : f32 to vector<16x128xf32>
    %61 = arith.addf %52, %60 : vector<16x128xf32>
    %62 = arith.mulf %52, %61 : vector<16x128xf32>
    %cst_24 = arith.constant 2.000000e+00 : f32
    %63 = vector.broadcast %cst_24 : f32 to vector<16x128xf32>
    %64 = arith.addf %52, %63 : vector<16x128xf32>
    %65 = arith.mulf %62, %64 : vector<16x128xf32>
    %66 = tpu.reciprocal %65 {approx = true} : vector<16x128xf32> -> vector<16x128xf32>
    %67 = arith.mulf %65, %66 : vector<16x128xf32>
    %cst_25 = arith.constant 2.000000e+00 : f32
    %68 = vector.broadcast %cst_25 : f32 to vector<16x128xf32>
    %69 = arith.subf %68, %67 : vector<16x128xf32>
    %70 = arith.mulf %66, %69 : vector<16x128xf32>
    %71 = arith.mulf %59, %70 : vector<16x128xf32>
    %cst_26 = arith.constant 3.000000e+00 : f32
    %72 = vector.broadcast %cst_26 : f32 to vector<16x128xf32>
    %73 = arith.addf %2, %72 : vector<16x128xf32>
    %74 = tpu.reciprocal %73 {approx = true} : vector<16x128xf32> -> vector<16x128xf32>
    %75 = arith.mulf %73, %74 : vector<16x128xf32>
    %cst_27 = arith.constant 2.000000e+00 : f32
    %76 = vector.broadcast %cst_27 : f32 to vector<16x128xf32>
    %77 = arith.subf %76, %75 : vector<16x128xf32>
    %78 = arith.mulf %74, %77 : vector<16x128xf32>
    %79 = arith.mulf %78, %78 : vector<16x128xf32>
    %80 = math.log %73 : vector<16x128xf32>
    %cst_28 = arith.constant 5.000000e-01 : f32
    %81 = vector.broadcast %cst_28 : f32 to vector<16x128xf32>
    %82 = arith.mulf %81, %78 : vector<16x128xf32>
    %83 = arith.subf %80, %82 : vector<16x128xf32>
    %cst_29 = arith.constant 0.0039682542 : f32
    %84 = vector.broadcast %cst_29 : f32 to vector<16x128xf32>
    %85 = arith.mulf %79, %84 : vector<16x128xf32>
    %cst_30 = arith.constant 0.00833333377 : f32
    %86 = vector.broadcast %cst_30 : f32 to vector<16x128xf32>
    %87 = arith.subf %86, %85 : vector<16x128xf32>
    %88 = arith.mulf %79, %87 : vector<16x128xf32>
    %cst_31 = arith.constant 0.0833333358 : f32
    %89 = vector.broadcast %cst_31 : f32 to vector<16x128xf32>
    %90 = arith.subf %89, %88 : vector<16x128xf32>
    %91 = arith.mulf %79, %90 : vector<16x128xf32>
    %92 = arith.subf %83, %91 : vector<16x128xf32>
    %93 = arith.subf %92, %71 : vector<16x128xf32>
    %cst_32 = arith.constant 1.000000e+06 : f32
    %94 = vector.broadcast %cst_32 : f32 to vector<16x128xf32>
    %95 = arith.minimumf %5, %94 : vector<16x128xf32>
    %cst_33 = arith.constant 3.000000e+00 : f32
    %96 = vector.broadcast %cst_33 : f32 to vector<16x128xf32>
    %97 = arith.mulf %96, %95 : vector<16x128xf32>
    %cst_34 = arith.constant 6.000000e+00 : f32
    %98 = vector.broadcast %cst_34 : f32 to vector<16x128xf32>
    %99 = arith.addf %97, %98 : vector<16x128xf32>
    %100 = arith.mulf %99, %95 : vector<16x128xf32>
    %cst_35 = arith.constant 2.000000e+00 : f32
    %101 = vector.broadcast %cst_35 : f32 to vector<16x128xf32>
    %102 = arith.addf %100, %101 : vector<16x128xf32>
    %cst_36 = arith.constant 1.000000e+00 : f32
    %103 = vector.broadcast %cst_36 : f32 to vector<16x128xf32>
    %104 = arith.addf %95, %103 : vector<16x128xf32>
    %105 = arith.mulf %95, %104 : vector<16x128xf32>
    %cst_37 = arith.constant 2.000000e+00 : f32
    %106 = vector.broadcast %cst_37 : f32 to vector<16x128xf32>
    %107 = arith.addf %95, %106 : vector<16x128xf32>
    %108 = arith.mulf %105, %107 : vector<16x128xf32>
    %109 = tpu.reciprocal %108 {approx = true} : vector<16x128xf32> -> vector<16x128xf32>
    %110 = arith.mulf %108, %109 : vector<16x128xf32>
    %cst_38 = arith.constant 2.000000e+00 : f32
    %111 = vector.broadcast %cst_38 : f32 to vector<16x128xf32>
    %112 = arith.subf %111, %110 : vector<16x128xf32>
    %113 = arith.mulf %109, %112 : vector<16x128xf32>
    %114 = arith.mulf %102, %113 : vector<16x128xf32>
    %cst_39 = arith.constant 3.000000e+00 : f32
    %115 = vector.broadcast %cst_39 : f32 to vector<16x128xf32>
    %116 = arith.addf %5, %115 : vector<16x128xf32>
    %117 = tpu.reciprocal %116 {approx = true} : vector<16x128xf32> -> vector<16x128xf32>
    %118 = arith.mulf %116, %117 : vector<16x128xf32>
    %cst_40 = arith.constant 2.000000e+00 : f32
    %119 = vector.broadcast %cst_40 : f32 to vector<16x128xf32>
    %120 = arith.subf %119, %118 : vector<16x128xf32>
    %121 = arith.mulf %117, %120 : vector<16x128xf32>
    %122 = arith.mulf %121, %121 : vector<16x128xf32>
    %123 = math.log %116 : vector<16x128xf32>
    %cst_41 = arith.constant 5.000000e-01 : f32
    %124 = vector.broadcast %cst_41 : f32 to vector<16x128xf32>
    %125 = arith.mulf %124, %121 : vector<16x128xf32>
    %126 = arith.subf %123, %125 : vector<16x128xf32>
    %cst_42 = arith.constant 0.0039682542 : f32
    %127 = vector.broadcast %cst_42 : f32 to vector<16x128xf32>
    %128 = arith.mulf %122, %127 : vector<16x128xf32>
    %cst_43 = arith.constant 0.00833333377 : f32
    %129 = vector.broadcast %cst_43 : f32 to vector<16x128xf32>
    %130 = arith.subf %129, %128 : vector<16x128xf32>
    %131 = arith.mulf %122, %130 : vector<16x128xf32>
    %cst_44 = arith.constant 0.0833333358 : f32
    %132 = vector.broadcast %cst_44 : f32 to vector<16x128xf32>
    %133 = arith.subf %132, %131 : vector<16x128xf32>
    %134 = arith.mulf %122, %133 : vector<16x128xf32>
    %135 = arith.subf %126, %134 : vector<16x128xf32>
    %136 = arith.subf %135, %114 : vector<16x128xf32>
    %137 = arith.subf %50, %136 : vector<16x128xf32>
    %138 = arith.subf %93, %136 : vector<16x128xf32>
    %139 = arith.mulf %6, %138 : vector<16x128xf32>
    %140 = arith.subf %137, %139 : vector<16x128xf32>
    %c0_45 = arith.constant 0 : index
    %c0_46 = arith.constant 0 : index
    %141 = vector.load %arg4[%c0_45, %c0_46] : memref<16x128xf32, #tpu.memory_space<vmem>>, vector<16x128xf32>
    tpu.vector_store %arg4[%c0_45, %c0_46], %140 {strides = array<i32>} : memref<16x128xf32, #tpu.memory_space<vmem>>, vector<16x128xf32>,
    return
  }
  func.func @transform_0(%arg0: i32) -> (i32, i32) {
    %c0_i32 = arith.constant 0 : i32
    %c0_i32_0 = arith.constant 0 : i32
    return %arg0, %c0_i32 : i32, i32
  }
  func.func @transform_1(%arg0: i32) -> (i32, i32) {
    %c0_i32 = arith.constant 0 : i32
    %c0_i32_0 = arith.constant 0 : i32
    return %arg0, %c0_i32 : i32, i32
  }
  func.func @transform_2(%arg0: i32) -> (i32, i32) {
    %c0_i32 = arith.constant 0 : i32
    %c0_i32_0 = arith.constant 0 : i32
    return %arg0, %c0_i32 : i32, i32
  }
  func.func @transform_3(%arg0: i32) -> (i32, i32) {
    %c0_i32 = arith.constant 0 : i32
    %c0_i32_0 = arith.constant 0 : i32
    return %arg0, %c0_i32 : i32, i32
  }
}

</mosaic_0001>

<llo_original>
// kernel: tpu_custom_call.1
$region0: #{tpu_custom_call.1}
  #allocation0 [shape = 'u32[]', space=smem, size = 0x4, offset = 0x4, fixed_abs, tag = 'smem constant byte address 0x4 - core index']
  #allocation1 [shape = 'u32[144,128]{1,0:T(1,128)}', space=vmem, size = 0x12000, scoped, tag = 'internal scratch']
  %s0 = inlined_call_operand.hbm [shape: f32[16,128], index: 0, kind: input, shape index: {}]
  %s1 = inlined_call_operand.hbm [shape: f32[16,128], index: 1, kind: input, shape index: {}]
  %s2 = inlined_call_operand.hbm [shape: f32[16,128], index: 2, kind: input, shape index: {}]
  %s3 = inlined_call_operand.hbm [shape: f32[16,128], index: 3, kind: output, shape index: {}]
  %s4 = sld [smem:[#allocation0]]
  $region34: #{tpu_custom_call.1} parent=0
    _
  %s6 = ssub.s32 1, %s4
  %s7 = scalar_select 0, %s6, %s4
  $region1: #{tpu_custom_call.1} parent=0
    #allocation2 [shape = 'u8[8192]{0}', space=vmem, size = 0x2000, scoped, tag = 'input window, operand 0, single buffered']
    #allocation3 [shape = 's32[1]{0}', space=sflag, size = 0x4, scoped, tag = 'scoped memory for tpu_custom_call.1']
    #allocation4 [shape = 's32[1]{0}', space=sflag, size = 0x4, scoped, tag = 'scoped memory for tpu_custom_call.1']
    #allocation5 [shape = 'u8[8192]{0}', space=vmem, size = 0x2000, scoped, tag = 'input window, operand 1, single buffered']
    #allocation6 [shape = 's32[1]{0}', space=sflag, size = 0x4, scoped, tag = 'scoped memory for tpu_custom_call.1']
    #allocation7 [shape = 'u8[8192]{0}', space=vmem, size = 0x2000, scoped, tag = 'input window, operand 2, single buffered']
    #allocation8 [shape = 'u8[8192]{0}', space=vmem, size = 0x2000, scoped, tag = 'output window, operand 0, single buffered']
    %8 = vsyncpa [#allocation3], 0
    %9 = vsyncpa [#allocation6], 0
    %10 = vsyncpa [#allocation4], 0
    // Predicated region
    $region2: #{tpu_custom_call.1} parent=1 // pred_check
      _
    $region3: #{tpu_custom_call.1} parent=1 // pred_check_branch
      %12 = sbr.rel (0) target = $region5
    $region4: #{tpu_custom_call.1} parent=1 // pred_region
      %s14 = ssub.s32 256, 256
      %15 = vsyncadd [#allocation3], %s14
      %s16 = sshll.u32 [#allocation2], 4
      %s17 = int_to_ptr.vmem [resolvable:$true] %s16
      %22 = dma.hbm_to_vmem [thread:$0]  %s0, 256, %s17, [#allocation3], 128, 128, 8
    $region5: #{tpu_custom_call.1} parent=1 // pred_fallthru
      _
    // Predicated region
    $region6: #{tpu_custom_call.1} parent=1 // pred_check
      _
    $region7: #{tpu_custom_call.1} parent=1 // pred_check_branch
      %24 = sbr.rel (0) target = $region9
    $region8: #{tpu_custom_call.1} parent=1 // pred_region
      %s26 = ssub.s32 256, 256
      %27 = vsyncadd [#allocation6], %s26
      %s28 = sshll.u32 [#allocation5], 4
      %s29 = int_to_ptr.vmem [resolvable:$true] %s28
      %34 = dma.hbm_to_vmem [thread:$0]  %s1, 256, %s29, [#allocation6], 128, 128, 8
    $region9: #{tpu_custom_call.1} parent=1 // pred_fallthru
      _
    // Predicated region
    $region10: #{tpu_custom_call.1} parent=1 // pred_check
      _
    $region11: #{tpu_custom_call.1} parent=1 // pred_check_branch
      %36 = sbr.rel (0) target = $region13
    $region12: #{tpu_custom_call.1} parent=1 // pred_region
      %s38 = ssub.s32 256, 256
      %39 = vsyncadd [#allocation6], %s38
      %s40 = sshll.u32 [#allocation7], 4
      %s41 = int_to_ptr.vmem [resolvable:$true] %s40
      %46 = dma.hbm_to_vmem [thread:$0]  %s2, 256, %s41, [#allocation6], 128, 128, 8
    $region13: #{tpu_custom_call.1} parent=1 // pred_fallthru
      _
    // Predicated region
    $region14: #{tpu_custom_call.1} parent=1 // pred_check
      _
    $region15: #{tpu_custom_call.1} parent=1 // pred_check_branch
      %48 = sbr.rel (0) target = $region17
    $region16: #{tpu_custom_call.1} parent=1 // pred_region
      %49 = dma.done [#allocation3], 256
    $region17: #{tpu_custom_call.1} parent=1 // pred_fallthru
      _
    // Predicated region
    $region18: #{tpu_custom_call.1} parent=1 // pred_check
      _
    $region19: #{tpu_custom_call.1} parent=1 // pred_check_branch
      %51 = sbr.rel (0) target = $region21
    $region20: #{tpu_custom_call.1} parent=1 // pred_region
      %52 = dma.done [#allocation6], 256
    $region21: #{tpu_custom_call.1} parent=1 // pred_fallthru
      _
    // Predicated region
    $region22: #{tpu_custom_call.1} parent=1 // pred_check
      _
    $region23: #{tpu_custom_call.1} parent=1 // pred_check_branch
      %54 = sbr.rel (0) target = $region25
    $region24: #{tpu_custom_call.1} parent=1 // pred_region
      %55 = dma.done [#allocation6], 256
    $region25: #{tpu_custom_call.1} parent=1 // pred_fallthru
      _
    %v56 = vld [vmem:[#allocation2] sm:$0xff]
    %v57 = vld [vmem:[#allocation2 + $0x8] sm:$0xff]
    %v58 = vmax.f32 %v56, 1e-07
    %v59 = vmax.f32 %v57, 1e-07
    %v60 = vld [vmem:[#allocation5] sm:$0xff]
    %v61 = vld [vmem:[#allocation5 + $0x8] sm:$0xff]
    %v62 = vmax.f32 %v60, 1e-07
    %v63 = vmax.f32 %v61, 1e-07
    %v64 = vld [vmem:[#allocation7] sm:$0xff]
    %v65 = vld [vmem:[#allocation7 + $0x8] sm:$0xff]
    %v66 = vadd.f32 %v58, %v62
    %v67 = vadd.f32 %v59, %v63
    %v68 = vmin.f32 %v66, 1000000.0
    %v69 = vmin.f32 %v67, 1000000.0
    %v70 = vmul.f32 %v68, 3.0
    %v71 = vmul.f32 %v69, 3.0
    %v72 = vadd.f32 %v70, 6.0
    %v73 = vadd.f32 %v71, 6.0
    %v74 = vmul.f32 %v72, %v68
    %v75 = vmul.f32 %v73, %v69
    %v76 = vadd.f32 %v74, 2.0
    %v77 = vadd.f32 %v75, 2.0
    %v78 = vadd.f32 %v68, 1.0
    %v79 = vadd.f32 %v69, 1.0
    %v80 = vmul.f32 %v68, %v78
    %v81 = vmul.f32 %v69, %v79
    %v82 = vadd.f32 %v68, 2.0
    %v83 = vadd.f32 %v69, 2.0
    %v84 = vmul.f32 %v80, %v82
    %v85 = vmul.f32 %v81, %v83
    %v86 = vrcp.pop %v84
    %v87 = vrcp.pop %v85
    %v88 = vmul.f32 %v84, %v86
    %v89 = vmul.f32 %v85, %v87
    %v90 = vsub.f32 2.0, %v88
    %v91 = vsub.f32 2.0, %v89
    %v92 = vmul.f32 %v86, %v90
    %v93 = vmul.f32 %v87, %v91
    %v94 = vmul.f32 %v76, %v92
    %v95 = vmul.f32 %v77, %v93
    %v96 = vadd.f32 %v66, 3.0
    %v97 = vadd.f32 %v67, 3.0
    %v98 = vrcp.pop %v96
    %v99 = vrcp.pop %v97
    %v100 = vmul.f32 %v96, %v98
    %v101 = vmul.f32 %v97, %v99
    %v102 = vsub.f32 2.0, %v100
    %v103 = vsub.f32 2.0, %v101
    %v104 = vmul.f32 %v98, %v102
    %v105 = vmul.f32 %v99, %v103
    %v106 = vmul.f32 %v104, %v104
    %v107 = vmul.f32 %v105, %v105
    %v108 = vlog2.pop %v96
    %v109 = vmul.f32 %v108, 0.6931472
    %v110 = vlog2.pop %v97
    %v111 = vmul.f32 %v110, 0.6931472
    %v112 = vmul.f32 %v104, 0.5
    %v113 = vmul.f32 %v105, 0.5
    %v114 = vsub.f32 %v109, %v112
    %v115 = vsub.f32 %v111, %v113
    %v116 = vmul.f32 %v106, 0.003968254
    %v117 = vmul.f32 %v107, 0.003968254
    %v118 = vsub.f32 0.008333334, %v116
    %v119 = vsub.f32 0.008333334, %v117
    %v120 = vmul.f32 %v106, %v118
    %v121 = vmul.f32 %v107, %v119
    %v122 = vsub.f32 0.083333336, %v120
    %v123 = vsub.f32 0.083333336, %v121
    %v124 = vmul.f32 %v106, %v122
    %v125 = vmul.f32 %v107, %v123
    %v126 = vsub.f32 %v114, %v124
    %v127 = vsub.f32 %v115, %v125
    %v128 = vsub.f32 %v126, %v94
    %v129 = vsub.f32 %v127, %v95
    %v130 = vmin.f32 %v58, 1000000.0
    %v131 = vmin.f32 %v59, 1000000.0
    %v132 = vmul.f32 %v130, 3.0
    %v133 = vmul.f32 %v131, 3.0
    %v134 = vadd.f32 %v132, 6.0
    %v135 = vadd.f32 %v133, 6.0
    %v136 = vmul.f32 %v134, %v130
    %v137 = vmul.f32 %v135, %v131
    %v138 = vadd.f32 %v136, 2.0
    %v139 = vadd.f32 %v137, 2.0
    %v140 = vadd.f32 %v130, 1.0
    %v141 = vadd.f32 %v131, 1.0
    %v142 = vmul.f32 %v130, %v140
    %v143 = vmul.f32 %v131, %v141
    %v144 = vadd.f32 %v130, 2.0
    %v145 = vadd.f32 %v131, 2.0
    %v146 = vmul.f32 %v142, %v144
    %v147 = vmul.f32 %v143, %v145
    %v148 = vrcp.pop %v146
    %v149 = vrcp.pop %v147
    %v150 = vmul.f32 %v146, %v148
    %v151 = vmul.f32 %v147, %v149
    %v152 = vsub.f32 2.0, %v150
    %v153 = vsub.f32 2.0, %v151
    %v154 = vmul.f32 %v148, %v152
    %v155 = vmul.f32 %v149, %v153
    %v156 = vmul.f32 %v138, %v154
    %v157 = vmul.f32 %v139, %v155
    %v158 = vadd.f32 %v58, 3.0
    %v159 = vadd.f32 %v59, 3.0
    %v160 = vrcp.pop %v158
    %v161 = vrcp.pop %v159
    %v162 = vmul.f32 %v158, %v160
    %v163 = vmul.f32 %v159, %v161
    %v164 = vsub.f32 2.0, %v162
    %v165 = vsub.f32 2.0, %v163
    %v166 = vmul.f32 %v160, %v164
    %v167 = vmul.f32 %v161, %v165
    %v168 = vmul.f32 %v166, %v166
    %v169 = vmul.f32 %v167, %v167
    %v170 = vlog2.pop %v158
    %v171 = vmul.f32 %v170, 0.6931472
    %v172 = vlog2.pop %v159
    %v173 = vmul.f32 %v172, 0.6931472
    %v174 = vmul.f32 %v166, 0.5
    %v175 = vmul.f32 %v167, 0.5
    %v176 = vsub.f32 %v171, %v174
    %v177 = vsub.f32 %v173, %v175
    %v178 = vmul.f32 %v168, 0.003968254
    %v179 = vmul.f32 %v169, 0.003968254
    %v180 = vsub.f32 0.008333334, %v178
    %v181 = vsub.f32 0.008333334, %v179
    %v182 = vmul.f32 %v168, %v180
    %v183 = vmul.f32 %v169, %v181
    %v184 = vsub.f32 0.083333336, %v182
    %v185 = vsub.f32 0.083333336, %v183
    %v186 = vmul.f32 %v168, %v184
    %v187 = vmul.f32 %v169, %v185
    %v188 = vsub.f32 %v176, %v186
    %v189 = vsub.f32 %v177, %v187
    %v190 = vsub.f32 %v188, %v156
    %v191 = vsub.f32 %v189, %v157
    %v192 = vmin.f32 %v62, 1000000.0
    %v193 = vmin.f32 %v63, 1000000.0
    %v194 = vmul.f32 %v192, 3.0
    %v195 = vmul.f32 %v193, 3.0
    %v196 = vadd.f32 %v194, 6.0
    %v197 = vadd.f32 %v195, 6.0
    %v198 = vmul.f32 %v196, %v192
    %v199 = vmul.f32 %v197, %v193
    %v200 = vadd.f32 %v198, 2.0
    %v201 = vadd.f32 %v199, 2.0
    %v202 = vadd.f32 %v192, 1.0
    %v203 = vadd.f32 %v193, 1.0
    %v204 = vmul.f32 %v192, %v202
    %v205 = vmul.f32 %v193, %v203
    %v206 = vadd.f32 %v192, 2.0
    %v207 = vadd.f32 %v193, 2.0
    %v208 = vmul.f32 %v204, %v206
    %v209 = vmul.f32 %v205, %v207
    %v210 = vrcp.pop %v208
    %v211 = vrcp.pop %v209
    %v212 = vmul.f32 %v208, %v210
    %v213 = vmul.f32 %v209, %v211
    %v214 = vsub.f32 2.0, %v212
    %v215 = vsub.f32 2.0, %v213
    %v216 = vmul.f32 %v210, %v214
    %v217 = vmul.f32 %v211, %v215
    %v218 = vmul.f32 %v200, %v216
    %v219 = vmul.f32 %v201, %v217
    %v220 = vadd.f32 %v62, 3.0
    %v221 = vadd.f32 %v63, 3.0
    %v222 = vrcp.pop %v220
    %v223 = vrcp.pop %v221
    %v224 = vmul.f32 %v220, %v222
    %v225 = vmul.f32 %v221, %v223
    %v226 = vsub.f32 2.0, %v224
    %v227 = vsub.f32 2.0, %v225
    %v228 = vmul.f32 %v222, %v226
    %v229 = vmul.f32 %v223, %v227
    %v230 = vmul.f32 %v228, %v228
    %v231 = vmul.f32 %v229, %v229
    %v232 = vlog2.pop %v220
    %v233 = vmul.f32 %v232, 0.6931472
    %v234 = vlog2.pop %v221
    %v235 = vmul.f32 %v234, 0.6931472
    %v236 = vmul.f32 %v228, 0.5
    %v237 = vmul.f32 %v229, 0.5
    %v238 = vsub.f32 %v233, %v236
    %v239 = vsub.f32 %v235, %v237
    %v240 = vmul.f32 %v230, 0.003968254
    %v241 = vmul.f32 %v231, 0.003968254
    %v242 = vsub.f32 0.008333334, %v240
    %v243 = vsub.f32 0.008333334, %v241
    %v244 = vmul.f32 %v230, %v242
    %v245 = vmul.f32 %v231, %v243
    %v246 = vsub.f32 0.083333336, %v244
    %v247 = vsub.f32 0.083333336, %v245
    %v248 = vmul.f32 %v230, %v246
    %v249 = vmul.f32 %v231, %v247
    %v250 = vsub.f32 %v238, %v248
    %v251 = vsub.f32 %v239, %v249
    %v252 = vsub.f32 %v250, %v218
    %v253 = vsub.f32 %v251, %v219
    %v254 = vsub.f32 %v128, %v252
    %v255 = vsub.f32 %v129, %v253
    %v256 = vsub.f32 %v190, %v252
    %v257 = vsub.f32 %v191, %v253
    %v258 = vmul.f32 %v64, %v256
    %v259 = vmul.f32 %v65, %v257
    %v260 = vsub.f32 %v254, %v258
    %v261 = vsub.f32 %v255, %v259
    %262 = vst [vmem:[#allocation8] sm:$0xff] %v260
    %263 = vst [vmem:[#allocation8 + $0x8] sm:$0xff] %v261
    // Predicated region
    $region26: #{tpu_custom_call.1} parent=1 // pred_check
      _
    $region27: #{tpu_custom_call.1} parent=1 // pred_check_branch
      %265 = sbr.rel (0) target = $region29
    $region28: #{tpu_custom_call.1} parent=1 // pred_region
      %s267 = ssub.s32 256, 256
      %268 = vsyncadd [#allocation4], %s267
      %s269 = sshll.u32 [#allocation8], 4
      %s270 = int_to_ptr.vmem [resolvable:$true] %s269
      %275 = dma.vmem_to_hbm [thread:$0]  %s270, 256, %s3, [#allocation4], 128, 128, 8
    $region29: #{tpu_custom_call.1} parent=1 // pred_fallthru
      _
    // Predicated region
    $region30: #{tpu_custom_call.1} parent=1 // pred_check
      _
    $region31: #{tpu_custom_call.1} parent=1 // pred_check_branch
      %277 = sbr.rel (0) target = $region33
    $region32: #{tpu_custom_call.1} parent=1 // pred_region
      %278 = dma.done [#allocation4], 256
    $region33: #{tpu_custom_call.1} parent=1 // pred_fallthru
      _
    %279 = vsyncpa [#allocation3], 1
    %280 = vsyncpa [#allocation6], 1
    %281 = vsyncpa [#allocation4], 1

</llo_original>
